<compile_context>
chip_gen: v5e
topology: v5e:2x2
jax: 0.10.0
libtpu: 0.0.40
codegen_flags: <defaults>
</compile_context>

<pallas_src>
import functools

import jax
import jax.numpy as jnp
from jax.experimental import pallas as pl
from jax.experimental.pallas import tpu as pltpu


def _roll_left(x, s, length):
    # y[..., j] = x[..., (j + s) % length]
    return pltpu.roll(x, shift=(length - s) % length, axis=x.ndim - 1)


def _roll_right(x, s):
    # y[..., j] = x[..., (j - s) % length]
    return pltpu.roll(x, shift=s, axis=x.ndim - 1)


def _seg_window_reduce(x, op, seg, length):
    """Prefix-doubling window reduce along lanes.

    Afterwards lane j holds op(x[j .. j+seg-1]) (indices mod `length`), so
    lanes at segment starts (j % seg == 0) hold the exact per-segment
    reduction; other lanes are discarded by the broadcast below.
    """
    w = 1
    while w < seg:
        s = min(w, seg - w)
        x = op(x, _roll_left(x, s, length))
        w += s
    return x


def _seg_broadcast_from_start(x, off, seg):
    """Copy each segment-start value to every lane of its segment.

    Select-only prefix copy (log2(seg) rolls + selects); never does arithmetic
    on the discarded lanes, so inf/NaN garbage there cannot propagate.
    """
    s = 1
    while s < seg:
        x = jnp.where(off >= s, _roll_right(x, s), x)
        s *= 2
    return x


def _shape_loss_kernel(pred_ref, target_ref, out_ref, *, seg, lanes, n_rows,
                       tile_rows, w0, w1, w2, compute_dtype):
    """One row-tile of packed sequences -> lane-dense (1, lanes) partial sum."""
    p = pred_ref[...].astype(compute_dtype)
    t = target_ref[...].astype(compute_dtype)

    # (1, lanes) lane offsets inside each packed segment (tiny temp only).
    lane = jax.lax.broadcasted_iota(jnp.int32, (1, lanes), 1)
    if (seg & (seg - 1)) == 0:
        off = jnp.bitwise_and(lane, seg - 1)
    else:
        off = lane % seg

    # Segmented min/max along the lane axis (exact at segment starts).
    p_min = _seg_window_reduce(p, jnp.minimum, seg, lanes)
    p_max = _seg_window_reduce(p, jnp.maximum, seg, lanes)
    t_min = _seg_window_reduce(t, jnp.minimum, seg, lanes)
    t_max = _seg_window_reduce(t, jnp.maximum, seg, lanes)

    # Reciprocal of the per-segment range (junk off segment starts is
    # overwritten by the select-only broadcast, so it is harmless).
    one = jnp.asarray(1.0, compute_dtype)
    inv_p = one / (p_max - p_min)
    inv_t = one / (t_max - t_min)

    p_min = _seg_broadcast_from_start(p_min, off, seg)
    t_min = _seg_broadcast_from_start(t_min, off, seg)
    inv_p = _seg_broadcast_from_start(inv_p, off, seg)
    inv_t = _seg_broadcast_from_start(inv_t, off, seg)

    # Difference of normalized curves, computed once; first/second finite
    # differences come from two *independent* rolls of d0 (algebraically
    # identical to diff(pred_norm) - diff(target_norm)).
    d0 = (p - p_min) * inv_p - (t - t_min) * inv_t
    r1 = _roll_left(d0, 1, lanes)
    r2 = _roll_left(d0, 2, lanes)
    d1 = r1 - d0
    d2 = (r2 - r1) - (r1 - d0)

    # (1, lanes) weight rows fold the mean divisors AND the tail-lane masks
    # (positions whose diff would cross a segment boundary get weight 0).
    mw1 = jnp.where(off < seg - 1, jnp.float32(w1), jnp.float32(0.0))
    mw2 = jnp.where(off < seg - 2, jnp.float32(w2), jnp.float32(0.0))

    # Square-accumulate in f32 even on the bf16 compute path.
    d0f = d0.astype(jnp.float32)
    d1f = d1.astype(jnp.float32)
    d2f = d2.astype(jnp.float32)
    ssq = (jnp.float32(w0) * (d0f * d0f)
           + mw1 * (d1f * d1f)
           + mw2 * (d2f * d2f))

    # Zero rows beyond the true packed-row count (only the last, ragged tile).
    # Done with a select so garbage (possibly NaN) rows cannot leak.
    if n_rows % tile_rows != 0:
        row = (pl.program_id(0) * tile_rows
               + jax.lax.broadcasted_iota(jnp.int32, (tile_rows, 1), 0))
        ssq = jnp.where(row < n_rows, ssq, jnp.float32(0.0))

    # Per-tile lane-dense partial (sublane fold only).  The final scalar
    # reduce happens in the wrapper, so the grid axis stays fully parallel.
    out_ref[0] = jnp.sum(ssq, axis=0, keepdims=True)


def shape_based_loss(pred, target, *, alpha=0.5, beta=0.3, gamma=0.2):
    """Pallas implementation of ShapeBasedLoss.forward. Returns a scalar f32."""
    assert pred.shape == target.shape and pred.ndim == 3
    B, C, S = pred.shape
    assert S >= 3, "sequence length must be >= 3 for second differences"
    R = B * C  # number of (batch, channel) rows

    # Lane packing: k whole sequences per 128-lane row.  (R, S) -> (R/k, k*S)
    # is a contiguous reshape (zero-copy).  Pick the largest k <= 128//S that
    # divides R so the reshape stays a pure view.
    k_max = max(1, 128 // S)
    k = 1
    for cand in range(min(k_max, R), 0, -1):
        if R % cand == 0:
            k = cand
            break
    # TODO(synk): when B*C has no divisor near 128//S (e.g. prime), rows could
    # be padded once to recover full lane packing at the cost of one HBM copy.

    lanes = k * S
    n_rows = R // k
    p2 = pred.reshape(n_rows, lanes)
    t2 = target.reshape(n_rows, lanes)

    itemsize = jnp.dtype(pred.dtype).itemsize
    sub = 16 if itemsize == 2 else 8           # native sublane packing per dtype
    # ~3 MiB per input block: 2 inputs x 2 pipeline buffers + the full-tile
    # temporaries stay inside the 48 MiB scoped-VMEM budget below, which also
    # fits v7x's smaller (64 MiB physical) VMEM.
    target_block_bytes = 3 * 1024 * 1024
    tile_rows = max(sub, (target_block_bytes // (lanes * itemsize)) // sub * sub)
    if tile_rows >= n_rows:
        tile_rows = n_rows                      # single (possibly ragged) tile
    num_tiles = pl.cdiv(n_rows, tile_rows)

    # bf16 inputs keep normalization/diff math in bf16 (v6e/v7x VPU-native);
    # squares are still accumulated in f32 inside the kernel.
    compute_dtype = jnp.bfloat16 if pred.dtype == jnp.bfloat16 else jnp.float32

    kernel = functools.partial(
        _shape_loss_kernel,
        seg=S, lanes=lanes, n_rows=n_rows, tile_rows=tile_rows,
        # Mean divisors use the TRUE element counts (masked lanes/rows add 0).
        w0=float(alpha) / float(R * S),
        w1=float(beta) / float(R * (S - 1)),
        w2=float(gamma) / float(R * (S - 2)),
        compute_dtype=compute_dtype,
    )

    partials = pl.pallas_call(
        kernel,
        out_shape=jax.ShapeDtypeStruct((num_tiles, 1, lanes), jnp.float32),
        grid=(num_tiles,),
        in_specs=[
            pl.BlockSpec((tile_rows, lanes), lambda i: (i, 0)),
            pl.BlockSpec((tile_rows, lanes), lambda i: (i, 0)),
        ],
        out_specs=pl.BlockSpec((1, 1, lanes), lambda i: (i, 0, 0)),
        compiler_params=pltpu.CompilerParams(
            dimension_semantics=("parallel",),
            vmem_limit_bytes=48 * 1024 * 1024),
        cost_estimate=pl.CostEstimate(
            flops=60 * R * S,
            transcendentals=0,
            bytes_accessed=2 * R * S * itemsize + 4 * num_tiles * lanes),
    )(p2, t2)

    # Tiny cross-tile / cross-lane reduction done once in XLA.
    return jnp.sum(partials)


def _reference(pred, target, alpha=0.5, beta=0.3, gamma=0.2):
    pn = (pred - pred.min(axis=2, keepdims=True)) / (
        pred.max(axis=2, keepdims=True) - pred.min(axis=2, keepdims=True))
    tn = (target - target.min(axis=2, keepdims=True)) / (
        target.max(axis=2, keepdims=True) - target.min(axis=2, keepdims=True))
    shape_loss = jnp.mean((pn - tn) ** 2)
    pg = pn[:, :, 1:] - pn[:, :, :-1]
    tg = tn[:, :, 1:] - tn[:, :, :-1]
    gradient_loss = jnp.mean((pg - tg) ** 2)
    pg2 = pg[:, :, 1:] - pg[:, :, :-1]
    tg2 = tg[:, :, 1:] - tg[:, :, :-1]
    curvature_loss = jnp.mean((pg2 - tg2) ** 2)
    return alpha * shape_loss + beta * gradient_loss + gamma * curvature_loss


if __name__ == "__main__":
    key = jax.random.PRNGKey(0)
    k1, k2 = jax.random.split(key)
    B, C, S = 2, 4, 16          # pred/target: [batch, channels, seq]
    pred = jax.random.normal(k1, (B, C, S), dtype=jnp.float32)
    target = jax.random.normal(k2, (B, C, S), dtype=jnp.float32)

    loss = shape_based_loss(pred, target)
    jax.block_until_ready(loss)

    ref = _reference(pred, target)
    assert jnp.allclose(loss, ref, rtol=1e-5, atol=1e-6), (loss, ref)

    print("KERNEL_OK")
</pallas_src>

<mosaic_0001>
module attributes {stable_mosaic.version = 11 : i64} {
  func.func @_shape_loss_kernel(%arg0: i32, %arg1: memref<1x128xf32, #tpu.memory_space<vmem>>, %arg2: memref<1x128xf32, #tpu.memory_space<vmem>>, %arg3: memref<1x1x128xf32, #tpu.memory_space<vmem>>) attributes {dimension_semantics = [#tpu.dimension_semantics<parallel>], iteration_bounds = array<i64: 1>, scalar_prefetch = 0 : i64, scratch_operands = 0 : i64, tpu.core_type = #tpu.core_type<tc>, window_params = [{transform_indices = @transform_0, window_bounds = array<i64: 1, 128>}, {transform_indices = @transform_1, window_bounds = array<i64: 1, 128>}, {transform_indices = @transform_2, window_bounds = array<i64: 1, 1, 128>}]} {
    %c0 = arith.constant 0 : index
    %c0_0 = arith.constant 0 : index
    %0 = vector.load %arg1[%c0, %c0_0] : memref<1x128xf32, #tpu.memory_space<vmem>>, vector<1x128xf32>
    %c0_1 = arith.constant 0 : index
    %c0_2 = arith.constant 0 : index
    %1 = vector.load %arg2[%c0_1, %c0_2] : memref<1x128xf32, #tpu.memory_space<vmem>>, vector<1x128xf32>
    %2 = tpu.iota {dimensions = array<i32: 1>} : vector<1x128xi32>
    %c15_i32 = arith.constant 15 : i32
    %3 = vector.broadcast %c15_i32 : i32 to vector<1x128xi32>
    %4 = arith.andi %2, %3 : vector<1x128xi32>
    %c127_i32 = arith.constant 127 : i32
    %5 = tpu.dynamic_rotate %0 by %c127_i32 dim 1 : vector<1x128xf32>, i32 -> vector<1x128xf32>
    %6 = arith.minimumf %0, %5 : vector<1x128xf32>
    %c126_i32 = arith.constant 126 : i32
    %7 = tpu.dynamic_rotate %6 by %c126_i32 dim 1 : vector<1x128xf32>, i32 -> vector<1x128xf32>
    %8 = arith.minimumf %6, %7 : vector<1x128xf32>
    %c124_i32 = arith.constant 124 : i32
    %9 = tpu.dynamic_rotate %8 by %c124_i32 dim 1 : vector<1x128xf32>, i32 -> vector<1x128xf32>
    %10 = arith.minimumf %8, %9 : vector<1x128xf32>
    %c120_i32 = arith.constant 120 : i32
    %11 = tpu.dynamic_rotate %10 by %c120_i32 dim 1 : vector<1x128xf32>, i32 -> vector<1x128xf32>
    %12 = arith.minimumf %10, %11 : vector<1x128xf32>
    %c127_i32_3 = arith.constant 127 : i32
    %13 = tpu.dynamic_rotate %0 by %c127_i32_3 dim 1 : vector<1x128xf32>, i32 -> vector<1x128xf32>
    %14 = arith.maximumf %0, %13 : vector<1x128xf32>
    %c126_i32_4 = arith.constant 126 : i32
    %15 = tpu.dynamic_rotate %14 by %c126_i32_4 dim 1 : vector<1x128xf32>, i32 -> vector<1x128xf32>
    %16 = arith.maximumf %14, %15 : vector<1x128xf32>
    %c124_i32_5 = arith.constant 124 : i32
    %17 = tpu.dynamic_rotate %16 by %c124_i32_5 dim 1 : vector<1x128xf32>, i32 -> vector<1x128xf32>
    %18 = arith.maximumf %16, %17 : vector<1x128xf32>
    %c120_i32_6 = arith.constant 120 : i32
    %19 = tpu.dynamic_rotate %18 by %c120_i32_6 dim 1 : vector<1x128xf32>, i32 -> vector<1x128xf32>
    %20 = arith.maximumf %18, %19 : vector<1x128xf32>
    %c127_i32_7 = arith.constant 127 : i32
    %21 = tpu.dynamic_rotate %1 by %c127_i32_7 dim 1 : vector<1x128xf32>, i32 -> vector<1x128xf32>
    %22 = arith.minimumf %1, %21 : vector<1x128xf32>
    %c126_i32_8 = arith.constant 126 : i32
    %23 = tpu.dynamic_rotate %22 by %c126_i32_8 dim 1 : vector<1x128xf32>, i32 -> vector<1x128xf32>
    %24 = arith.minimumf %22, %23 : vector<1x128xf32>
    %c124_i32_9 = arith.constant 124 : i32
    %25 = tpu.dynamic_rotate %24 by %c124_i32_9 dim 1 : vector<1x128xf32>, i32 -> vector<1x128xf32>
    %26 = arith.minimumf %24, %25 : vector<1x128xf32>
    %c120_i32_10 = arith.constant 120 : i32
    %27 = tpu.dynamic_rotate %26 by %c120_i32_10 dim 1 : vector<1x128xf32>, i32 -> vector<1x128xf32>
    %28 = arith.minimumf %26, %27 : vector<1x128xf32>
    %c127_i32_11 = arith.constant 127 : i32
    %29 = tpu.dynamic_rotate %1 by %c127_i32_11 dim 1 : vector<1x128xf32>, i32 -> vector<1x128xf32>
    %30 = arith.maximumf %1, %29 : vector<1x128xf32>
    %c126_i32_12 = arith.constant 126 : i32
    %31 = tpu.dynamic_rotate %30 by %c126_i32_12 dim 1 : vector<1x128xf32>, i32 -> vector<1x128xf32>
    %32 = arith.maximumf %30, %31 : vector<1x128xf32>
    %c124_i32_13 = arith.constant 124 : i32
    %33 = tpu.dynamic_rotate %32 by %c124_i32_13 dim 1 : vector<1x128xf32>, i32 -> vector<1x128xf32>
    %34 = arith.maximumf %32, %33 : vector<1x128xf32>
    %c120_i32_14 = arith.constant 120 : i32
    %35 = tpu.dynamic_rotate %34 by %c120_i32_14 dim 1 : vector<1x128xf32>, i32 -> vector<1x128xf32>
    %36 = arith.maximumf %34, %35 : vector<1x128xf32>
    %37 = arith.subf %20, %12 : vector<1x128xf32>
    %cst = arith.constant 1.000000e+00 : f32
    %38 = vector.broadcast %cst : f32 to vector<1x128xf32>
    %39 = arith.divf %38, %37 : vector<1x128xf32>
    %40 = arith.subf %36, %28 : vector<1x128xf32>
    %cst_15 = arith.constant 1.000000e+00 : f32
    %41 = vector.broadcast %cst_15 : f32 to vector<1x128xf32>
    %42 = arith.divf %41, %40 : vector<1x128xf32>
    %c1_i32 = arith.constant 1 : i32
    %43 = vector.broadcast %c1_i32 : i32 to vector<1x128xi32>
    %44 = arith.cmpi sge, %4, %43 : vector<1x128xi32>
    %c1_i32_16 = arith.constant 1 : i32
    %45 = tpu.dynamic_rotate %12 by %c1_i32_16 dim 1 : vector<1x128xf32>, i32 -> vector<1x128xf32>
    %46 = arith.select %44, %45, %12 : vector<1x128xi1>, vector<1x128xf32>
    %c2_i32 = arith.constant 2 : i32
    %47 = vector.broadcast %c2_i32 : i32 to vector<1x128xi32>
    %48 = arith.cmpi sge, %4, %47 : vector<1x128xi32>
    %c2_i32_17 = arith.constant 2 : i32
    %49 = tpu.dynamic_rotate %46 by %c2_i32_17 dim 1 : vector<1x128xf32>, i32 -> vector<1x128xf32>
    %50 = arith.select %48, %49, %46 : vector<1x128xi1>, vector<1x128xf32>
    %c4_i32 = arith.constant 4 : i32
    %51 = vector.broadcast %c4_i32 : i32 to vector<1x128xi32>
    %52 = arith.cmpi sge, %4, %51 : vector<1x128xi32>
    %c4_i32_18 = arith.constant 4 : i32
    %53 = tpu.dynamic_rotate %50 by %c4_i32_18 dim 1 : vector<1x128xf32>, i32 -> vector<1x128xf32>
    %54 = arith.select %52, %53, %50 : vector<1x128xi1>, vector<1x128xf32>
    %c8_i32 = arith.constant 8 : i32
    %55 = vector.broadcast %c8_i32 : i32 to vector<1x128xi32>
    %56 = arith.cmpi sge, %4, %55 : vector<1x128xi32>
    %c8_i32_19 = arith.constant 8 : i32
    %57 = tpu.dynamic_rotate %54 by %c8_i32_19 dim 1 : vector<1x128xf32>, i32 -> vector<1x128xf32>
    %58 = arith.select %56, %57, %54 : vector<1x128xi1>, vector<1x128xf32>
    %c1_i32_20 = arith.constant 1 : i32
    %59 = vector.broadcast %c1_i32_20 : i32 to vector<1x128xi32>
    %60 = arith.cmpi sge, %4, %59 : vector<1x128xi32>
    %c1_i32_21 = arith.constant 1 : i32
    %61 = tpu.dynamic_rotate %28 by %c1_i32_21 dim 1 : vector<1x128xf32>, i32 -> vector<1x128xf32>
    %62 = arith.select %60, %61, %28 : vector<1x128xi1>, vector<1x128xf32>
    %c2_i32_22 = arith.constant 2 : i32
    %63 = vector.broadcast %c2_i32_22 : i32 to vector<1x128xi32>
    %64 = arith.cmpi sge, %4, %63 : vector<1x128xi32>
    %c2_i32_23 = arith.constant 2 : i32
    %65 = tpu.dynamic_rotate %62 by %c2_i32_23 dim 1 : vector<1x128xf32>, i32 -> vector<1x128xf32>
    %66 = arith.select %64, %65, %62 : vector<1x128xi1>, vector<1x128xf32>
    %c4_i32_24 = arith.constant 4 : i32
    %67 = vector.broadcast %c4_i32_24 : i32 to vector<1x128xi32>
    %68 = arith.cmpi sge, %4, %67 : vector<1x128xi32>
    %c4_i32_25 = arith.constant 4 : i32
    %69 = tpu.dynamic_rotate %66 by %c4_i32_25 dim 1 : vector<1x128xf32>, i32 -> vector<1x128xf32>
    %70 = arith.select %68, %69, %66 : vector<1x128xi1>, vector<1x128xf32>
    %c8_i32_26 = arith.constant 8 : i32
    %71 = vector.broadcast %c8_i32_26 : i32 to vector<1x128xi32>
    %72 = arith.cmpi sge, %4, %71 : vector<1x128xi32>
    %c8_i32_27 = arith.constant 8 : i32
    %73 = tpu.dynamic_rotate %70 by %c8_i32_27 dim 1 : vector<1x128xf32>, i32 -> vector<1x128xf32>
    %74 = arith.select %72, %73, %70 : vector<1x128xi1>, vector<1x128xf32>
    %c1_i32_28 = arith.constant 1 : i32
    %75 = vector.broadcast %c1_i32_28 : i32 to vector<1x128xi32>
    %76 = arith.cmpi sge, %4, %75 : vector<1x128xi32>
    %c1_i32_29 = arith.constant 1 : i32
    %77 = tpu.dynamic_rotate %39 by %c1_i32_29 dim 1 : vector<1x128xf32>, i32 -> vector<1x128xf32>
    %78 = arith.select %76, %77, %39 : vector<1x128xi1>, vector<1x128xf32>
    %c2_i32_30 = arith.constant 2 : i32
    %79 = vector.broadcast %c2_i32_30 : i32 to vector<1x128xi32>
    %80 = arith.cmpi sge, %4, %79 : vector<1x128xi32>
    %c2_i32_31 = arith.constant 2 : i32
    %81 = tpu.dynamic_rotate %78 by %c2_i32_31 dim 1 : vector<1x128xf32>, i32 -> vector<1x128xf32>
    %82 = arith.select %80, %81, %78 : vector<1x128xi1>, vector<1x128xf32>
    %c4_i32_32 = arith.constant 4 : i32
    %83 = vector.broadcast %c4_i32_32 : i32 to vector<1x128xi32>
    %84 = arith.cmpi sge, %4, %83 : vector<1x128xi32>
    %c4_i32_33 = arith.constant 4 : i32
    %85 = tpu.dynamic_rotate %82 by %c4_i32_33 dim 1 : vector<1x128xf32>, i32 -> vector<1x128xf32>
    %86 = arith.select %84, %85, %82 : vector<1x128xi1>, vector<1x128xf32>
    %c8_i32_34 = arith.constant 8 : i32
    %87 = vector.broadcast %c8_i32_34 : i32 to vector<1x128xi32>
    %88 = arith.cmpi sge, %4, %87 : vector<1x128xi32>
    %c8_i32_35 = arith.constant 8 : i32
    %89 = tpu.dynamic_rotate %86 by %c8_i32_35 dim 1 : vector<1x128xf32>, i32 -> vector<1x128xf32>
    %90 = arith.select %88, %89, %86 : vector<1x128xi1>, vector<1x128xf32>
    %c1_i32_36 = arith.constant 1 : i32
    %91 = vector.broadcast %c1_i32_36 : i32 to vector<1x128xi32>
    %92 = arith.cmpi sge, %4, %91 : vector<1x128xi32>
    %c1_i32_37 = arith.constant 1 : i32
    %93 = tpu.dynamic_rotate %42 by %c1_i32_37 dim 1 : vector<1x128xf32>, i32 -> vector<1x128xf32>
    %94 = arith.select %92, %93, %42 : vector<1x128xi1>, vector<1x128xf32>
    %c2_i32_38 = arith.constant 2 : i32
    %95 = vector.broadcast %c2_i32_38 : i32 to vector<1x128xi32>
    %96 = arith.cmpi sge, %4, %95 : vector<1x128xi32>
    %c2_i32_39 = arith.constant 2 : i32
    %97 = tpu.dynamic_rotate %94 by %c2_i32_39 dim 1 : vector<1x128xf32>, i32 -> vector<1x128xf32>
    %98 = arith.select %96, %97, %94 : vector<1x128xi1>, vector<1x128xf32>
    %c4_i32_40 = arith.constant 4 : i32
    %99 = vector.broadcast %c4_i32_40 : i32 to vector<1x128xi32>
    %100 = arith.cmpi sge, %4, %99 : vector<1x128xi32>
    %c4_i32_41 = arith.constant 4 : i32
    %101 = tpu.dynamic_rotate %98 by %c4_i32_41 dim 1 : vector<1x128xf32>, i32 -> vector<1x128xf32>
    %102 = arith.select %100, %101, %98 : vector<1x128xi1>, vector<1x128xf32>
    %c8_i32_42 = arith.constant 8 : i32
    %103 = vector.broadcast %c8_i32_42 : i32 to vector<1x128xi32>
    %104 = arith.cmpi sge, %4, %103 : vector<1x128xi32>
    %c8_i32_43 = arith.constant 8 : i32
    %105 = tpu.dynamic_rotate %102 by %c8_i32_43 dim 1 : vector<1x128xf32>, i32 -> vector<1x128xf32>
    %106 = arith.select %104, %105, %102 : vector<1x128xi1>, vector<1x128xf32>
    %107 = arith.subf %0, %58 : vector<1x128xf32>
    %108 = arith.mulf %107, %90 : vector<1x128xf32>
    %109 = arith.subf %1, %74 : vector<1x128xf32>
    %110 = arith.mulf %109, %106 : vector<1x128xf32>
    %111 = arith.subf %108, %110 : vector<1x128xf32>
    %c127_i32_44 = arith.constant 127 : i32
    %112 = tpu.dynamic_rotate %111 by %c127_i32_44 dim 1 : vector<1x128xf32>, i32 -> vector<1x128xf32>
    %c126_i32_45 = arith.constant 126 : i32
    %113 = tpu.dynamic_rotate %111 by %c126_i32_45 dim 1 : vector<1x128xf32>, i32 -> vector<1x128xf32>
    %114 = arith.subf %112, %111 : vector<1x128xf32>
    %115 = arith.subf %113, %112 : vector<1x128xf32>
    %116 = arith.subf %112, %111 : vector<1x128xf32>
    %117 = arith.subf %115, %116 : vector<1x128xf32>
    %c15_i32_46 = arith.constant 15 : i32
    %118 = vector.broadcast %c15_i32_46 : i32 to vector<1x128xi32>
    %119 = arith.cmpi slt, %4, %118 : vector<1x128xi32>
    %cst_47 = arith.constant 2.500000e-03 : f32
    %cst_48 = arith.constant 0.000000e+00 : f32
    %120 = vector.broadcast %cst_47 : f32 to vector<1x128xf32>
    %121 = vector.broadcast %cst_48 : f32 to vector<1x128xf32>
    %122 = arith.select %119, %120, %121 : vector<1x128xi1>, vector<1x128xf32>
    %c14_i32 = arith.constant 14 : i32
    %123 = vector.broadcast %c14_i32 : i32 to vector<1x128xi32>
    %124 = arith.cmpi slt, %4, %123 : vector<1x128xi32>
    %cst_49 = arith.constant 0.0017857143 : f32
    %cst_50 = arith.constant 0.000000e+00 : f32
    %125 = vector.broadcast %cst_49 : f32 to vector<1x128xf32>
    %126 = vector.broadcast %cst_50 : f32 to vector<1x128xf32>
    %127 = arith.select %124, %125, %126 : vector<1x128xi1>, vector<1x128xf32>
    %128 = arith.mulf %111, %111 : vector<1x128xf32>
    %cst_51 = arith.constant 3.906250e-03 : f32
    %129 = vector.broadcast %cst_51 : f32 to vector<1x128xf32>
    %130 = arith.mulf %129, %128 : vector<1x128xf32>
    %131 = arith.mulf %114, %114 : vector<1x128xf32>
    %132 = arith.mulf %122, %131 : vector<1x128xf32>
    %133 = arith.addf %130, %132 : vector<1x128xf32>
    %134 = arith.mulf %117, %117 : vector<1x128xf32>
    %135 = arith.mulf %127, %134 : vector<1x128xf32>
    %136 = arith.addf %133, %135 : vector<1x128xf32>
    %cst_52 = arith.constant dense<0.000000e+00> : vector<128xf32>
    %137 = vector.multi_reduction <add>, %136, %cst_52 [0] : vector<1x128xf32> to vector<128xf32>
    %138 = vector.shape_cast %137 : vector<128xf32> to vector<1x128xf32>
    %c0_53 = arith.constant 0 : index
    %c0_54 = arith.constant 0 : index
    %c0_55 = arith.constant 0 : index
    %139 = vector.load %arg3[%c0_53, %c0_54, %c0_55] : memref<1x1x128xf32, #tpu.memory_space<vmem>>, vector<1x1x128xf32>
    %140 = vector.shape_cast %139 : vector<1x1x128xf32> to vector<1x128xf32>
    %141 = vector.shape_cast %138 : vector<1x128xf32> to vector<1x1x128xf32>
    tpu.vector_store %arg3[%c0_53, %c0_54, %c0_55], %141 {strides = array<i32>} : memref<1x1x128xf32, #tpu.memory_space<vmem>>, vector<1x1x128xf32>,
    return
  }
  func.func @transform_0(%arg0: i32) -> (i32, i32) {
    %c0_i32 = arith.constant 0 : i32
    %c0_i32_0 = arith.constant 0 : i32
    return %arg0, %c0_i32 : i32, i32
  }
  func.func @transform_1(%arg0: i32) -> (i32, i32) {
    %c0_i32 = arith.constant 0 : i32
    %c0_i32_0 = arith.constant 0 : i32
    return %arg0, %c0_i32 : i32, i32
  }
  func.func @transform_2(%arg0: i32) -> (i32, i32, i32) {
    %c0_i32 = arith.constant 0 : i32
    %c0_i32_0 = arith.constant 0 : i32
    %c0_i32_1 = arith.constant 0 : i32
    return %arg0, %c0_i32, %c0_i32_0 : i32, i32, i32
  }
}

</mosaic_0001>

<llo_original>
// kernel: tpu_custom_call.1
$region0: #{tpu_custom_call.1}
  #allocation0 [shape = 'u32[]', space=smem, size = 0x4, offset = 0x4, fixed_abs, tag = 'smem constant byte address 0x4 - core index']
  #allocation1 [shape = 'u32[72,128]{1,0:T(1,128)}', space=vmem, size = 0x9000, scoped, tag = 'internal scratch']
  %s0 = inlined_call_operand.hbm [shape: f32[1,128], index: 0, kind: input, shape index: {}]
  %s1 = inlined_call_operand.hbm [shape: f32[1,128], index: 1, kind: input, shape index: {}]
  %s2 = inlined_call_operand.hbm [shape: f32[1,1,128], index: 2, kind: output, shape index: {}]
  %s3 = sld [smem:[#allocation0]]
  $region26: #{tpu_custom_call.1} parent=0
    _
  %s5 = ssub.s32 1, %s3
  %s6 = scalar_select 0, %s5, %s3
  $region1: #{tpu_custom_call.1} parent=0
    #allocation2 [shape = 'u8[512]{0}', space=vmem, size = 0x400, scoped, tag = 'input window, operand 0, single buffered']
    #allocation3 [shape = 's32[1]{0}', space=sflag, size = 0x4, scoped, tag = 'scoped memory for tpu_custom_call.1']
    #allocation4 [shape = 's32[1]{0}', space=sflag, size = 0x4, scoped, tag = 'scoped memory for tpu_custom_call.1']
    #allocation5 [shape = 'u8[512]{0}', space=vmem, size = 0x400, scoped, tag = 'input window, operand 1, single buffered']
    #allocation6 [shape = 's32[1]{0}', space=sflag, size = 0x4, scoped, tag = 'scoped memory for tpu_custom_call.1']
    #allocation7 [shape = 'u8[512]{0}', space=vmem, size = 0x400, scoped, tag = 'output window, operand 0, single buffered']
    %7 = vsyncpa [#allocation3], 0
    %8 = vsyncpa [#allocation6], 0
    %9 = vsyncpa [#allocation4], 0
    // Predicated region
    $region2: #{tpu_custom_call.1} parent=1 // pred_check
      _
    $region3: #{tpu_custom_call.1} parent=1 // pred_check_branch
      %11 = sbr.rel (0) target = $region5
    $region4: #{tpu_custom_call.1} parent=1 // pred_region
      %13 = vsyncadd [#allocation3], 0
      %s15 = sshll.u32 %s0, 4
      %s16 = int_to_ptr.hbm [resolvable:$true] %s15
      %s17 = sshll.u32 [#allocation2], 4
      %s18 = int_to_ptr.vmem [resolvable:$true] %s17
      %20 = dma.hbm_to_vmem [thread:$0]  %s16, 16, %s18, [#allocation3]
    $region5: #{tpu_custom_call.1} parent=1 // pred_fallthru
      _
    // Predicated region
    $region6: #{tpu_custom_call.1} parent=1 // pred_check
      _
    $region7: #{tpu_custom_call.1} parent=1 // pred_check_branch
      %22 = sbr.rel (0) target = $region9
    $region8: #{tpu_custom_call.1} parent=1 // pred_region
      %24 = vsyncadd [#allocation6], 0
      %s26 = sshll.u32 %s1, 4
      %s27 = int_to_ptr.hbm [resolvable:$true] %s26
      %s28 = sshll.u32 [#allocation5], 4
      %s29 = int_to_ptr.vmem [resolvable:$true] %s28
      %31 = dma.hbm_to_vmem [thread:$0]  %s27, 16, %s29, [#allocation6]
    $region9: #{tpu_custom_call.1} parent=1 // pred_fallthru
      _
    // Predicated region
    $region10: #{tpu_custom_call.1} parent=1 // pred_check
      _
    $region11: #{tpu_custom_call.1} parent=1 // pred_check_branch
      %33 = sbr.rel (0) target = $region13
    $region12: #{tpu_custom_call.1} parent=1 // pred_region
      %35 = dma.done [#allocation3], 16
    $region13: #{tpu_custom_call.1} parent=1 // pred_fallthru
      _
    // Predicated region
    $region14: #{tpu_custom_call.1} parent=1 // pred_check
      _
    $region15: #{tpu_custom_call.1} parent=1 // pred_check_branch
      %37 = sbr.rel (0) target = $region17
    $region16: #{tpu_custom_call.1} parent=1 // pred_region
      %39 = dma.done [#allocation6], 16
    $region17: #{tpu_custom_call.1} parent=1 // pred_fallthru
      _
    %v40 = vld [vmem:[#allocation2] sm:$0x1]
    %v41 = vld [vmem:[#allocation5] sm:$0x1]
    %v42 = vlaneseq
    %v43 = vand.u32 %v42, 127
    %v44 = vand.u32 %v43, 15
    %45 = vrot.lane.b32.xlu0 %v40, 127
    %v46 = vpop.permute.xlu0 %45
    %v47 = vmin.f32 %v40, %v46
    %48 = vrot.lane.b32.xlu0 %v47, 126
    %v49 = vpop.permute.xlu0 %48
    %v50 = vmin.f32 %v47, %v49
    %51 = vrot.lane.b32.xlu0 %v50, 124
    %v52 = vpop.permute.xlu0 %51
    %v53 = vmin.f32 %v50, %v52
    %54 = vrot.lane.b32.xlu0 %v53, 120
    %v55 = vpop.permute.xlu0 %54
    %v56 = vmin.f32 %v53, %v55
    %v57 = vmax.f32 %v40, %v46
    %58 = vrot.lane.b32.xlu0 %v57, 126
    %v59 = vpop.permute.xlu0 %58
    %v60 = vmax.f32 %v57, %v59
    %61 = vrot.lane.b32.xlu0 %v60, 124
    %v62 = vpop.permute.xlu0 %61
    %v63 = vmax.f32 %v60, %v62
    %64 = vrot.lane.b32.xlu0 %v63, 120
    %v65 = vpop.permute.xlu0 %64
    %v66 = vmax.f32 %v63, %v65
    %67 = vrot.lane.b32.xlu0 %v41, 127
    %v68 = vpop.permute.xlu0 %67
    %v69 = vmin.f32 %v41, %v68
    %70 = vrot.lane.b32.xlu0 %v69, 126
    %v71 = vpop.permute.xlu0 %70
    %v72 = vmin.f32 %v69, %v71
    %73 = vrot.lane.b32.xlu0 %v72, 124
    %v74 = vpop.permute.xlu0 %73
    %v75 = vmin.f32 %v72, %v74
    %76 = vrot.lane.b32.xlu0 %v75, 120
    %v77 = vpop.permute.xlu0 %76
    %v78 = vmin.f32 %v75, %v77
    %v79 = vmax.f32 %v41, %v68
    %80 = vrot.lane.b32.xlu0 %v79, 126
    %v81 = vpop.permute.xlu0 %80
    %v82 = vmax.f32 %v79, %v81
    %83 = vrot.lane.b32.xlu0 %v82, 124
    %v84 = vpop.permute.xlu0 %83
    %v85 = vmax.f32 %v82, %v84
    %86 = vrot.lane.b32.xlu0 %v85, 120
    %v87 = vpop.permute.xlu0 %86
    %v88 = vmax.f32 %v85, %v87
    %v89 = vsub.f32 %v66, %v56
    %v90 = vrcp.pop %v89
    %v91 = vmul.f32 %v89, %v90
    %v92 = vsub.f32 1.0, %v91
    %v93 = vmul.f32 %v90, %v92
    %v94 = vadd.f32 %v90, %v93
    %vm95 = vweird.f32 %v89
    %vm96 = vweird.f32 %v90
    %vm97 = vmor %vm95, %vm96
    %v98 = vsel %vm97, %v90, %v94
    %v99 = vand.u32 2147483647, %v89
    %vm100 = vcmp.eq.f32.partialorder %v99, 8.507059e+37
    %v101 = vand.u32 %v89, 2147483648
    %v102 = vor.u32 1.1754944e-38, %v101
    %v103 = vsel %vm100, %v102, %v98
    %v104 = vmul.f32 1.0, %v103
    %v105 = vsub.f32 %v88, %v78
    %v106 = vrcp.pop %v105
    %v107 = vmul.f32 %v105, %v106
    %v108 = vsub.f32 1.0, %v107
    %v109 = vmul.f32 %v106, %v108
    %v110 = vadd.f32 %v106, %v109
    %vm111 = vweird.f32 %v105
    %vm112 = vweird.f32 %v106
    %vm113 = vmor %vm111, %vm112
    %v114 = vsel %vm113, %v106, %v110
    %v115 = vand.u32 2147483647, %v105
    %vm116 = vcmp.eq.f32.partialorder %v115, 8.507059e+37
    %v117 = vand.u32 %v105, 2147483648
    %v118 = vor.u32 1.1754944e-38, %v117
    %v119 = vsel %vm116, %v118, %v114
    %v120 = vmul.f32 1.0, %v119
    %vm121 = vcmp.ge.s32.totalorder %v44, 1
    %122 = vrot.lane.b32.xlu0 %v56, 1
    %v123 = vpop.permute.xlu0 %122
    %v124 = vsel %vm121, %v123, %v56
    %vm125 = vcmp.ge.s32.totalorder %v44, 2
    %126 = vrot.lane.b32.xlu0 %v124, 2
    %v127 = vpop.permute.xlu0 %126
    %v128 = vsel %vm125, %v127, %v124
    %vm129 = vcmp.ge.s32.totalorder %v44, 4
    %130 = vrot.lane.b32.xlu0 %v128, 4
    %v131 = vpop.permute.xlu0 %130
    %v132 = vsel %vm129, %v131, %v128
    %vm133 = vcmp.ge.s32.totalorder %v44, 8
    %134 = vrot.lane.b32.xlu0 %v132, 8
    %v135 = vpop.permute.xlu0 %134
    %v136 = vsel %vm133, %v135, %v132
    %137 = vrot.lane.b32.xlu0 %v78, 1
    %v138 = vpop.permute.xlu0 %137
    %v139 = vsel %vm121, %v138, %v78
    %140 = vrot.lane.b32.xlu0 %v139, 2
    %v141 = vpop.permute.xlu0 %140
    %v142 = vsel %vm125, %v141, %v139
    %143 = vrot.lane.b32.xlu0 %v142, 4
    %v144 = vpop.permute.xlu0 %143
    %v145 = vsel %vm129, %v144, %v142
    %146 = vrot.lane.b32.xlu0 %v145, 8
    %v147 = vpop.permute.xlu0 %146
    %v148 = vsel %vm133, %v147, %v145
    %149 = vrot.lane.b32.xlu0 %v104, 1
    %v150 = vpop.permute.xlu0 %149
    %v151 = vsel %vm121, %v150, %v104
    %152 = vrot.lane.b32.xlu0 %v151, 2
    %v153 = vpop.permute.xlu0 %152
    %v154 = vsel %vm125, %v153, %v151
    %155 = vrot.lane.b32.xlu0 %v154, 4
    %v156 = vpop.permute.xlu0 %155
    %v157 = vsel %vm129, %v156, %v154
    %158 = vrot.lane.b32.xlu0 %v157, 8
    %v159 = vpop.permute.xlu0 %158
    %v160 = vsel %vm133, %v159, %v157
    %161 = vrot.lane.b32.xlu0 %v120, 1
    %v162 = vpop.permute.xlu0 %161
    %v163 = vsel %vm121, %v162, %v120
    %164 = vrot.lane.b32.xlu0 %v163, 2
    %v165 = vpop.permute.xlu0 %164
    %v166 = vsel %vm125, %v165, %v163
    %167 = vrot.lane.b32.xlu0 %v166, 4
    %v168 = vpop.permute.xlu0 %167
    %v169 = vsel %vm129, %v168, %v166
    %170 = vrot.lane.b32.xlu0 %v169, 8
    %v171 = vpop.permute.xlu0 %170
    %v172 = vsel %vm133, %v171, %v169
    %v173 = vsub.f32 %v40, %v136
    %v174 = vmul.f32 %v173, %v160
    %v175 = vsub.f32 %v41, %v148
    %v176 = vmul.f32 %v175, %v172
    %v177 = vsub.f32 %v174, %v176
    %178 = vrot.lane.b32.xlu0 %v177, 127
    %v179 = vpop.permute.xlu0 %178
    %180 = vrot.lane.b32.xlu0 %v177, 126
    %v181 = vpop.permute.xlu0 %180
    %v182 = vsub.f32 %v179, %v177
    %v183 = vsub.f32 %v181, %v179
    %v184 = vsub.f32 %v183, %v182
    %vm185 = vcmp.lt.s32.totalorder %v44, 15
    %v186 = vsel %vm185, 0.0025, 0.0
    %vm187 = vcmp.lt.s32.totalorder %v44, 14
    %v188 = vsel %vm187, 0.0017857143, 0.0
    %v189 = vmul.f32 %v177, %v177
    %v190 = vmul.f32 %v189, 0.00390625
    %v191 = vmul.f32 %v182, %v182
    %v192 = vmul.f32 %v186, %v191
    %v193 = vadd.f32 %v190, %v192
    %v194 = vmul.f32 %v184, %v184
    %v195 = vmul.f32 %v188, %v194
    %v196 = vadd.f32 %v193, %v195
    %v197 = vadd.f32 %v196, 0.0
    %198 = vst [vmem:[#allocation7] sm:$0x1] %v197
    // Predicated region
    $region18: #{tpu_custom_call.1} parent=1 // pred_check
      _
    $region19: #{tpu_custom_call.1} parent=1 // pred_check_branch
      %200 = sbr.rel (0) target = $region21
    $region20: #{tpu_custom_call.1} parent=1 // pred_region
      %202 = vsyncadd [#allocation4], 0
      %s204 = sshll.u32 [#allocation7], 4
      %s205 = int_to_ptr.vmem [resolvable:$true] %s204
      %s206 = sshll.u32 %s2, 4
      %s207 = int_to_ptr.hbm [resolvable:$true] %s206
      %209 = dma.vmem_to_hbm [thread:$0]  %s205, 16, %s207, [#allocation4]
    $region21: #{tpu_custom_call.1} parent=1 // pred_fallthru
      _
    // Predicated region
    $region22: #{tpu_custom_call.1} parent=1 // pred_check
      _
    $region23: #{tpu_custom_call.1} parent=1 // pred_check_branch
      %211 = sbr.rel (0) target = $region25
    $region24: #{tpu_custom_call.1} parent=1 // pred_region
      %213 = dma.done [#allocation4], 16
    $region25: #{tpu_custom_call.1} parent=1 // pred_fallthru
      _
    %214 = vsyncpa [#allocation3], 1
    %215 = vsyncpa [#allocation6], 1
    %216 = vsyncpa [#allocation4], 1

</llo_original>
